<compile_context>
chip_gen: v6e
topology: v6e:2x2x1
jax: 0.10.0
libtpu: 0.0.40
codegen_flags: <defaults>
</compile_context>

<pallas_src>
import functools

import jax
import jax.numpy as jnp
from jax import lax
from jax.experimental import pallas as pl
from jax.experimental.pallas import tpu as pltpu

EPSILON = 1e-5
_SUB = 8           # base sublane rows per inner strip (f32); scaled up for narrow dtypes
_NEG_BIG = -1e9    # lane-pad logit: tanh saturates exactly to -1 -> p == 0


def _bf16_eup_native():
    """True if the attached TPU has bf16-native VPU/EUP (v6e, v7x, ...)."""
    try:
        kind = jax.devices()[0].device_kind.lower()
    except Exception:
        return False
    for old in ("v2", "v3", "v4", "v5 lite", "v5e", "v5lite"):
        if old in kind:
            return False
    return True


def _round_up(x, m):
    return ((x + m - 1) // m) * m


def _dice_partials_kernel(x_ref, lab_ref, inter_ref, denom_ref, *,
                          sub, tiles_per_split, total_tiles, tail_rows,
                          overshoot, compute_dtype, unroll_cap, fold_per_strip):
    # x_ref:   (C, tk, 128) logits tile (f32 or bf16)
    # lab_ref: (tk, 128)    int32 label tile
    # inter_ref, denom_ref: (C, 128) f32 partial sums, resident across the tile axis.
    m = pl.program_id(2)
    t = pl.program_id(1) * tiles_per_split + m          # global spatial-tile index

    @pl.when(m == 0)
    def _():
        inter_ref[...] = jnp.zeros_like(inter_ref)
        denom_ref[...] = jnp.zeros_like(denom_ref)

    C, tk, _ = x_ref.shape
    n_strips_full = tk // sub
    ragged = tail_rows != tk                              # static

    # Hoisted loop invariants (channel iota for the in-kernel one-hot, row iota for masks).
    ch_iota = lax.broadcasted_iota(jnp.int32, (C, sub, 128), 0)
    row_iota = lax.broadcasted_iota(jnp.int32, (sub, 128), 0)

    def run_strips(n_strips, row_limit):
        if fold_per_strip:
            zeros = jnp.zeros((C, 128), jnp.float32)      # tiny carry for large C
        else:
            zeros = jnp.zeros((C, sub, 128), jnp.float32)

        def body(i, carry):
            inter, denom = carry
            off = pl.multiple_of(i * sub, sub)
            x = x_ref[:, pl.ds(off, sub), :].astype(compute_dtype)
            # Single EUP push per vreg (vs exp + reciprocal for sigmoid).
            p = (0.5 * jnp.tanh(0.5 * x) + 0.5).astype(jnp.float32)
            lab = lab_ref[pl.ds(off, sub), :]             # (sub, 128) int32
            match = lab[None, :, :] == ch_iota            # in-kernel one-hot
            if row_limit is None:
                inter_c = jnp.where(match, p, 0.0)
                denom_c = p + match.astype(jnp.float32)
            else:
                valid = ((off + row_iota) < row_limit)[None]   # mask stale/OOB tail rows
                inter_c = jnp.where(match & valid, p, 0.0)
                denom_c = jnp.where(valid, p + match.astype(jnp.float32), 0.0)
            if fold_per_strip:
                inter = inter + jnp.sum(inter_c, axis=1)
                denom = denom + jnp.sum(denom_c, axis=1)
            else:
                inter = inter + inter_c
                denom = denom + denom_c
            return inter, denom

        u = max(1, min(unroll_cap, n_strips))
        inter, denom = lax.fori_loop(0, n_strips, body, (zeros, zeros), unroll=u)
        if fold_per_strip:
            inter_ref[...] += inter
            denom_ref[...] += denom
        else:
            # Fold only the sublane axis here; lanes stay 128-dense until the JAX epilogue.
            inter_ref[...] += jnp.sum(inter, axis=1)
            denom_ref[...] += jnp.sum(denom, axis=1)

    if (not ragged) and (not overshoot):
        run_strips(n_strips_full, None)
    elif not ragged:
        @pl.when(t < total_tiles)
        def _():
            run_strips(n_strips_full, None)
    else:
        @pl.when(t < total_tiles - 1)
        def _():
            run_strips(n_strips_full, None)

        @pl.when(t == total_tiles - 1)
        def _():
            run_strips(-(-tail_rows // sub), tail_rows)


def dice_loss(logits, labels, *, epsilon=EPSILON, tile_m=None):
    """DiceLoss.forward (sigmoid normalization, weight=None, ignore_index=None).

    logits: (N, C, D, H, W) float array (float32 or bfloat16).
    labels: (N, D, H, W) integer label map with values in [0, C); the one-hot expansion
            (expand_as_one_hot) is built inside the kernel against a channel iota.
    """
    # TODO(synk): per-class `weight`, `ignore_index`, softmax normalization and a
    # pre-expanded 5-D one-hot/soft target path are not wired into the kernel
    # (module defaults: weight=None, ignore_index=None, sigmoid_normalization=True).
    # TODO(synk): int8 label streaming (C < 128) would cut ~15% HBM traffic for small C but
    # needs 32-row-aligned strips; kept int32 for lowering safety.
    N, C, D, H, W = logits.shape
    assert labels.shape == (N, D, H, W), (labels.shape, logits.shape)
    Ms = D * H * W

    itemsize = jnp.dtype(logits.dtype).itemsize
    sub = _SUB * max(1, 4 // itemsize)          # 8 (f32), 16 (bf16)
    m_align = sub * 128

    # bf16 EUP/VPU where the hardware has it; otherwise upcast before the math.
    if logits.dtype == jnp.bfloat16 and _bf16_eup_native():
        compute_dtype = jnp.bfloat16
    else:
        compute_dtype = jnp.float32

    # --- layout: free reshapes only; lane-remainder pad is a rare, minimal fallback -------
    x = logits.reshape(N, C, Ms)
    lab = labels.astype(jnp.int32).reshape(N, Ms)
    Mp = max(_round_up(Ms, 128), m_align)
    if Mp != Ms:
        # TODO(synk): fallback copy (<128 pad elems per row) only when D*H*W % 128 != 0.
        x = jnp.pad(x, ((0, 0), (0, 0), (0, Mp - Ms)), constant_values=_NEG_BIG)
        lab = jnp.pad(lab, ((0, 0), (0, Mp - Ms)), constant_values=-1)
    K = Mp // 128
    x = x.reshape(N, C, K, 128)
    lab = lab.reshape(N, K, 128)

    # --- tile selection: ~4 MiB of streamed bytes (logits + labels) per grid step ---------
    bytes_per_row = 128 * (C * itemsize + 4)
    if tile_m is None:
        tgt_rows = max(sub, ((4 << 20) // bytes_per_row) // sub * sub)
    else:
        tgt_rows = max(sub, (int(tile_m) // 128) // sub * sub)
    tk = min(tgt_rows, (K // sub) * sub)
    T = pl.cdiv(K, tk)                       # total spatial tiles (last one may be ragged)
    tail_rows = K - (T - 1) * tk             # valid sublane rows in the last tile

    S = min(2, T)                            # split tiles across both v7x TensorCores
    Ts = pl.cdiv(T, S)
    overshoot = S * Ts > T

    # Unroll capped by vreg budget (~3*C*(sub/8) live temps per unrolled iteration).
    unroll_cap = max(1, min(4, 48 // max(1, 3 * C * (sub // 8))))
    # Large C: fold sublanes every strip so the fori carry stays tiny (avoids spills).
    fold_per_strip = 2 * C * (sub // 8) > 16

    # --- VMEM budget: default double buffering; raise + clamp only for huge tiles ---------
    pipeline_bytes = 2 * tk * bytes_per_row + 4 * C * 128 * 4
    cp_kwargs = dict(dimension_semantics=("parallel", "parallel", "arbitrary"))
    if pipeline_bytes > 12 * 2**20:
        try:
            vmem_cap = int(pltpu.get_tpu_info().vmem_capacity_bytes)
        except Exception:
            vmem_cap = 64 * 2**20            # conservative (v7x physical VMEM)
        ceiling = max(16 * 2**20, vmem_cap - 16 * 2**20)
        cp_kwargs["vmem_limit_bytes"] = int(min(ceiling, 2 * pipeline_bytes))

    kernel = functools.partial(
        _dice_partials_kernel,
        sub=sub, tiles_per_split=Ts, total_tiles=T, tail_rows=tail_rows,
        overshoot=overshoot, compute_dtype=compute_dtype,
        unroll_cap=unroll_cap, fold_per_strip=fold_per_strip)

    inter_out, denom_out = pl.pallas_call(
        kernel,
        out_shape=(
            jax.ShapeDtypeStruct((N * S, C, 128), jnp.float32),
            jax.ShapeDtypeStruct((N * S, C, 128), jnp.float32),
        ),
        grid_spec=pltpu.PrefetchScalarGridSpec(
            num_scalar_prefetch=0,
            grid=(N, S, Ts),
            in_specs=[
                pl.BlockSpec((pl.Squeezed(), C, tk, 128),
                             lambda n, s, m: (n, 0, jnp.minimum(s * Ts + m, T - 1), 0)),
                pl.BlockSpec((pl.Squeezed(), tk, 128),
                             lambda n, s, m: (n, jnp.minimum(s * Ts + m, T - 1), 0)),
            ],
            out_specs=[
                pl.BlockSpec((pl.Squeezed(), C, 128), lambda n, s, m: (n * S + s, 0, 0)),
                pl.BlockSpec((pl.Squeezed(), C, 128), lambda n, s, m: (n * S + s, 0, 0)),
            ],
        ),
        compiler_params=pltpu.CompilerParams(**cp_kwargs),
    )(x, lab)

    # --- tiny finalize in plain JAX --------------------------------------------------------
    intersect = jnp.sum(inter_out, axis=(0, 2))                    # (C,)
    denominator = jnp.sum(denom_out, axis=(0, 2))                  # (C,)
    dice = 2.0 * intersect / jnp.maximum(denominator, epsilon)     # clamp(min=eps)
    return jnp.mean(1.0 - dice)


def _reference_dice_loss(logits, labels, epsilon=EPSILON):
    """Pure-JAX reference matching the PyTorch DiceLoss forward."""
    N, C = logits.shape[:2]
    p = jax.nn.sigmoid(logits.astype(jnp.float32))
    t = jnp.moveaxis(jax.nn.one_hot(labels, C, dtype=jnp.float32), -1, 1)  # (N,C,D,H,W)
    pf = jnp.moveaxis(p, 1, 0).reshape(C, -1)
    tf = jnp.moveaxis(t, 1, 0).reshape(C, -1)
    intersect = jnp.sum(pf * tf, axis=-1)
    denominator = jnp.maximum(jnp.sum(pf + tf, axis=-1), epsilon)
    return jnp.mean(1.0 - 2.0 * intersect / denominator)


if __name__ == "__main__":
    key = jax.random.PRNGKey(0)
    loss_fn = jax.jit(dice_loss)

    cases = [
        ("aligned",            (2, 4, 8, 16, 16)),    # primary small 3D U-Net style case
        ("ragged_tail",        (2, 4, 4, 8, 120)),    # 128-aligned, tile count non-divisible
        ("lane_pad_fallback",  (1, 3, 5, 6, 50)),     # D*H*W % 128 != 0
        ("wide_channels",      (1, 20, 2, 16, 32)),   # exercises per-strip sublane fold
    ]

    for i, (name, (N, C, D, H, W)) in enumerate(cases):
        k1, k2 = jax.random.split(jax.random.fold_in(key, i))
        logits = jax.random.normal(k1, (N, C, D, H, W), dtype=jnp.float32)
        labels = jax.random.randint(k2, (N, D, H, W), 0, C)

        loss = jax.block_until_ready(loss_fn(logits, labels))
        ref = jax.block_until_ready(_reference_dice_loss(logits, labels))

        assert jnp.isfinite(loss), (name, loss)
        # tanh-form sigmoid + sequential lane accumulation -> compare at a loose tolerance.
        assert jnp.abs(loss - ref) < 1e-3, (name, loss, ref)

    print("KERNEL_OK")
</pallas_src>

<mosaic_0001>
module attributes {stable_mosaic.version = 11 : i64} {
  func.func @_dice_partials_kernel(%arg0: i32, %arg1: i32, %arg2: i32, %arg3: memref<1x4x16x128xf32, #tpu.memory_space<vmem>>, %arg4: memref<1x16x128xi32, #tpu.memory_space<vmem>>, %arg5: memref<1x4x128xf32, #tpu.memory_space<vmem>>, %arg6: memref<1x4x128xf32, #tpu.memory_space<vmem>>) attributes {dimension_semantics = [#tpu.dimension_semantics<parallel>, #tpu.dimension_semantics<parallel>, #tpu.dimension_semantics<arbitrary>], iteration_bounds = array<i64: 2, 1, 1>, scalar_prefetch = 0 : i64, scratch_operands = 0 : i64, tpu.core_type = #tpu.core_type<tc>, window_params = [{transform_indices = @transform_0, window_bounds = array<i64: 1, 4, 16, 128>}, {transform_indices = @transform_1, window_bounds = array<i64: 1, 16, 128>}, {transform_indices = @transform_2, window_bounds = array<i64: 1, 4, 128>}, {transform_indices = @transform_3, window_bounds = array<i64: 1, 4, 128>}]} {
    %c0_i32 = arith.constant 0 : i32
    %0 = arith.cmpi eq, %arg2, %c0_i32 : i32
    %1 = arith.extui %0 : i1 to i32
    %c0_i32_0 = arith.constant 0 : i32
    %2 = arith.cmpi ne, %1, %c0_i32_0 : i32
    scf.if %2 {
      %cst_34 = arith.constant 0.000000e+00 : f32
      %69 = vector.broadcast %cst_34 : f32 to vector<4x128xf32>
      %c0_35 = arith.constant 0 : index
      %c0_36 = arith.constant 0 : index
      %c0_37 = arith.constant 0 : index
      %70 = vector.load %arg5[%c0_35, %c0_36, %c0_37] : memref<1x4x128xf32, #tpu.memory_space<vmem>>, vector<1x4x128xf32>
      %71 = vector.shape_cast %70 : vector<1x4x128xf32> to vector<4x128xf32>
      %72 = vector.shape_cast %69 : vector<4x128xf32> to vector<1x4x128xf32>
      tpu.vector_store %arg5[%c0_35, %c0_36, %c0_37], %72 {strides = array<i32>} : memref<1x4x128xf32, #tpu.memory_space<vmem>>, vector<1x4x128xf32>,
      %cst_38 = arith.constant 0.000000e+00 : f32
      %73 = vector.broadcast %cst_38 : f32 to vector<4x128xf32>
      %c0_39 = arith.constant 0 : index
      %c0_40 = arith.constant 0 : index
      %c0_41 = arith.constant 0 : index
      %74 = vector.load %arg6[%c0_39, %c0_40, %c0_41] : memref<1x4x128xf32, #tpu.memory_space<vmem>>, vector<1x4x128xf32>
      %75 = vector.shape_cast %74 : vector<1x4x128xf32> to vector<4x128xf32>
      %76 = vector.shape_cast %73 : vector<4x128xf32> to vector<1x4x128xf32>
      tpu.vector_store %arg6[%c0_39, %c0_40, %c0_41], %76 {strides = array<i32>} : memref<1x4x128xf32, #tpu.memory_space<vmem>>, vector<1x4x128xf32>,
    } else {
    }
    %3 = tpu.iota {dimensions = array<i32: 0>} : vector<4x8x128xi32>
    %cst = arith.constant 0.000000e+00 : f32
    %4 = vector.broadcast %cst : f32 to vector<4x8x128xf32>
    %c0_i32_1 = arith.constant 0 : i32
    %c8_i32 = arith.constant 8 : i32
    %5 = arith.muli %c0_i32_1, %c8_i32 : i32
    %6 = tpu.assume_multiple %5, 8 : i32
    %c0 = arith.constant 0 : index
    %c0_2 = arith.constant 0 : index
    %7 = arith.index_cast %6 : i32 to index
    %c0_3 = arith.constant 0 : index
    %8 = vector.load %arg3[%c0, %c0_2, %7, %c0_3] : memref<1x4x16x128xf32, #tpu.memory_space<vmem>>, vector<1x4x8x128xf32>
    %9 = vector.shape_cast %8 : vector<1x4x8x128xf32> to vector<4x8x128xf32>
    %cst_4 = arith.constant 5.000000e-01 : f32
    %10 = vector.broadcast %cst_4 : f32 to vector<4x8x128xf32>
    %11 = arith.mulf %10, %9 : vector<4x8x128xf32>
    %12 = math.tanh %11 : vector<4x8x128xf32>
    %cst_5 = arith.constant 5.000000e-01 : f32
    %13 = vector.broadcast %cst_5 : f32 to vector<4x8x128xf32>
    %14 = arith.mulf %13, %12 : vector<4x8x128xf32>
    %cst_6 = arith.constant 5.000000e-01 : f32
    %15 = vector.broadcast %cst_6 : f32 to vector<4x8x128xf32>
    %16 = arith.addf %14, %15 : vector<4x8x128xf32>
    %c0_7 = arith.constant 0 : index
    %17 = arith.index_cast %6 : i32 to index
    %c0_8 = arith.constant 0 : index
    %18 = vector.load %arg4[%c0_7, %17, %c0_8] : memref<1x16x128xi32, #tpu.memory_space<vmem>>, vector<1x8x128xi32>
    %19 = vector.shape_cast %18 : vector<1x8x128xi32> to vector<8x128xi32>
    %20 = vector.shape_cast %19 : vector<8x128xi32> to vector<1x8x128xi32>
    %21 = vector.broadcast %20 : vector<1x8x128xi32> to vector<4x8x128xi32>
    %22 = arith.cmpi eq, %21, %3 : vector<4x8x128xi32>
    %cst_9 = arith.constant 0.000000e+00 : f32
    %23 = vector.broadcast %cst_9 : f32 to vector<4x8x128xf32>
    %24 = arith.select %22, %16, %23 : vector<4x8x128xi1>, vector<4x8x128xf32>
    %25 = arith.extui %22 : vector<4x8x128xi1> to vector<4x8x128xi32>
    %26 = arith.sitofp %25 : vector<4x8x128xi32> to vector<4x8x128xf32>
    %27 = arith.addf %16, %26 : vector<4x8x128xf32>
    %28 = arith.addf %4, %24 : vector<4x8x128xf32>
    %29 = arith.addf %4, %27 : vector<4x8x128xf32>
    %c1_i32 = arith.constant 1 : i32
    %c8_i32_10 = arith.constant 8 : i32
    %30 = arith.muli %c1_i32, %c8_i32_10 : i32
    %31 = tpu.assume_multiple %30, 8 : i32
    %c0_11 = arith.constant 0 : index
    %c0_12 = arith.constant 0 : index
    %32 = arith.index_cast %31 : i32 to index
    %c0_13 = arith.constant 0 : index
    %33 = vector.load %arg3[%c0_11, %c0_12, %32, %c0_13] : memref<1x4x16x128xf32, #tpu.memory_space<vmem>>, vector<1x4x8x128xf32>
    %34 = vector.shape_cast %33 : vector<1x4x8x128xf32> to vector<4x8x128xf32>
    %cst_14 = arith.constant 5.000000e-01 : f32
    %35 = vector.broadcast %cst_14 : f32 to vector<4x8x128xf32>
    %36 = arith.mulf %35, %34 : vector<4x8x128xf32>
    %37 = math.tanh %36 : vector<4x8x128xf32>
    %cst_15 = arith.constant 5.000000e-01 : f32
    %38 = vector.broadcast %cst_15 : f32 to vector<4x8x128xf32>
    %39 = arith.mulf %38, %37 : vector<4x8x128xf32>
    %cst_16 = arith.constant 5.000000e-01 : f32
    %40 = vector.broadcast %cst_16 : f32 to vector<4x8x128xf32>
    %41 = arith.addf %39, %40 : vector<4x8x128xf32>
    %c0_17 = arith.constant 0 : index
    %42 = arith.index_cast %31 : i32 to index
    %c0_18 = arith.constant 0 : index
    %43 = vector.load %arg4[%c0_17, %42, %c0_18] : memref<1x16x128xi32, #tpu.memory_space<vmem>>, vector<1x8x128xi32>
    %44 = vector.shape_cast %43 : vector<1x8x128xi32> to vector<8x128xi32>
    %45 = vector.shape_cast %44 : vector<8x128xi32> to vector<1x8x128xi32>
    %46 = vector.broadcast %45 : vector<1x8x128xi32> to vector<4x8x128xi32>
    %47 = arith.cmpi eq, %46, %3 : vector<4x8x128xi32>
    %cst_19 = arith.constant 0.000000e+00 : f32
    %48 = vector.broadcast %cst_19 : f32 to vector<4x8x128xf32>
    %49 = arith.select %47, %41, %48 : vector<4x8x128xi1>, vector<4x8x128xf32>
    %50 = arith.extui %47 : vector<4x8x128xi1> to vector<4x8x128xi32>
    %51 = arith.sitofp %50 : vector<4x8x128xi32> to vector<4x8x128xf32>
    %52 = arith.addf %41, %51 : vector<4x8x128xf32>
    %53 = arith.addf %28, %49 : vector<4x8x128xf32>
    %54 = arith.addf %29, %52 : vector<4x8x128xf32>
    %c2_i32 = arith.constant 2 : i32
    %c0_20 = arith.constant 0 : index
    %c0_21 = arith.constant 0 : index
    %c0_22 = arith.constant 0 : index
    %55 = vector.load %arg5[%c0_20, %c0_21, %c0_22] : memref<1x4x128xf32, #tpu.memory_space<vmem>>, vector<1x4x128xf32>
    %56 = vector.shape_cast %55 : vector<1x4x128xf32> to vector<4x128xf32>
    %cst_23 = arith.constant dense<0.000000e+00> : vector<4x128xf32>
    %57 = vector.multi_reduction <add>, %53, %cst_23 [1] : vector<4x8x128xf32> to vector<4x128xf32>
    %58 = arith.addf %56, %57 : vector<4x128xf32>
    %c0_24 = arith.constant 0 : index
    %c0_25 = arith.constant 0 : index
    %c0_26 = arith.constant 0 : index
    %59 = vector.load %arg5[%c0_24, %c0_25, %c0_26] : memref<1x4x128xf32, #tpu.memory_space<vmem>>, vector<1x4x128xf32>
    %60 = vector.shape_cast %59 : vector<1x4x128xf32> to vector<4x128xf32>
    %61 = vector.shape_cast %58 : vector<4x128xf32> to vector<1x4x128xf32>
    tpu.vector_store %arg5[%c0_24, %c0_25, %c0_26], %61 {strides = array<i32>} : memref<1x4x128xf32, #tpu.memory_space<vmem>>, vector<1x4x128xf32>,
    %c0_27 = arith.constant 0 : index
    %c0_28 = arith.constant 0 : index
    %c0_29 = arith.constant 0 : index
    %62 = vector.load %arg6[%c0_27, %c0_28, %c0_29] : memref<1x4x128xf32, #tpu.memory_space<vmem>>, vector<1x4x128xf32>
    %63 = vector.shape_cast %62 : vector<1x4x128xf32> to vector<4x128xf32>
    %cst_30 = arith.constant dense<0.000000e+00> : vector<4x128xf32>
    %64 = vector.multi_reduction <add>, %54, %cst_30 [1] : vector<4x8x128xf32> to vector<4x128xf32>
    %65 = arith.addf %63, %64 : vector<4x128xf32>
    %c0_31 = arith.constant 0 : index
    %c0_32 = arith.constant 0 : index
    %c0_33 = arith.constant 0 : index
    %66 = vector.load %arg6[%c0_31, %c0_32, %c0_33] : memref<1x4x128xf32, #tpu.memory_space<vmem>>, vector<1x4x128xf32>
    %67 = vector.shape_cast %66 : vector<1x4x128xf32> to vector<4x128xf32>
    %68 = vector.shape_cast %65 : vector<4x128xf32> to vector<1x4x128xf32>
    tpu.vector_store %arg6[%c0_31, %c0_32, %c0_33], %68 {strides = array<i32>} : memref<1x4x128xf32, #tpu.memory_space<vmem>>, vector<1x4x128xf32>,
    return
  }
  func.func @transform_0(%arg0: i32, %arg1: i32, %arg2: i32) -> (i32, i32, i32, i32) {
    %c1_i32 = arith.constant 1 : i32
    %0 = arith.muli %arg1, %c1_i32 : i32
    %1 = arith.addi %0, %arg2 : i32
    %c0_i32 = arith.constant 0 : i32
    %2 = arith.minsi %1, %c0_i32 : i32
    %c0_i32_0 = arith.constant 0 : i32
    %c0_i32_1 = arith.constant 0 : i32
    %c0_i32_2 = arith.constant 0 : i32
    return %arg0, %c0_i32_0, %2, %c0_i32_1 : i32, i32, i32, i32
  }
  func.func @transform_1(%arg0: i32, %arg1: i32, %arg2: i32) -> (i32, i32, i32) {
    %c1_i32 = arith.constant 1 : i32
    %0 = arith.muli %arg1, %c1_i32 : i32
    %1 = arith.addi %0, %arg2 : i32
    %c0_i32 = arith.constant 0 : i32
    %2 = arith.minsi %1, %c0_i32 : i32
    %c0_i32_0 = arith.constant 0 : i32
    %c0_i32_1 = arith.constant 0 : i32
    return %arg0, %2, %c0_i32_0 : i32, i32, i32
  }
  func.func @transform_2(%arg0: i32, %arg1: i32, %arg2: i32) -> (i32, i32, i32) {
    %c1_i32 = arith.constant 1 : i32
    %0 = arith.muli %arg0, %c1_i32 : i32
    %1 = arith.addi %0, %arg1 : i32
    %c0_i32 = arith.constant 0 : i32
    %c0_i32_0 = arith.constant 0 : i32
    %c0_i32_1 = arith.constant 0 : i32
    return %1, %c0_i32, %c0_i32_0 : i32, i32, i32
  }
  func.func @transform_3(%arg0: i32, %arg1: i32, %arg2: i32) -> (i32, i32, i32) {
    %c1_i32 = arith.constant 1 : i32
    %0 = arith.muli %arg0, %c1_i32 : i32
    %1 = arith.addi %0, %arg1 : i32
    %c0_i32 = arith.constant 0 : i32
    %c0_i32_0 = arith.constant 0 : i32
    %c0_i32_1 = arith.constant 0 : i32
    return %1, %c0_i32, %c0_i32_0 : i32, i32, i32
  }
}

</mosaic_0001>

<llo_original>
// kernel: dice_loss.1
$region0: #{dice_loss.1}
  #allocation0 [shape = 'u32[]', space=smem, size = 0x4, offset = 0x4, fixed_abs, tag = 'smem constant byte address 0x4 - core index']
  #allocation1 [shape = 'u32[144,128]{1,0:T(1,128)}', space=vmem, size = 0x12000, scoped, tag = 'internal scratch']
  %s0 = inlined_call_operand.vmem [shape: f32[2,4,16,128], index: 0, kind: input, shape index: {}]
  %s1 = inlined_call_operand.vmem [shape: s32[2,16,128], index: 1, kind: input, shape index: {}]
  %s2 = inlined_call_operand.vmem [shape: f32[2,4,128], index: 2, kind: output, shape index: {0}]
  %s3 = inlined_call_operand.vmem [shape: f32[2,4,128], index: 3, kind: output, shape index: {1}]
  %4 = xla_tuple %s2, %s3
  %s5 = sld [smem:[#allocation0]]
  $region53: #{dice_loss.1} parent=0
    _
  %s7 = ssub.s32 1, %s5
  %s8 = scalar_select 0, %s7, %s5
  loop: start=0, step=1, limit=4
  $region2: #{dice_loss.1} parent=0 // loop_pre_header
    _
  $region3: #{dice_loss.1} parent=0 // loop_header
    %s10 = sphi 0, %s14
    %p11 = scmp.ge.s32.totalorder %s10, 4
    %s17 = sphi 0, %s36
    %s18 = sphi 0, %s32
    %s19 = sphi 0, %s28
    %s20 = sphi 0, %s17
    %s21 = sphi 0, %s18
    %s22 = sphi 0, %s19
    %s23 = sphi 0, %s20
    %s24 = sphi 0, %s21
    %s25 = sphi 0, %s22
    %s47 = sphi 0, %s49
    %s50 = sphi 0, %s47
    %s51 = sphi 0, %s50
    %s67 = sphi 0, %s51
    %s81 = sphi 0, %s83
    %s84 = sphi 0, %s81
    %s85 = sphi 0, %s84
    %s101 = sphi 0, %s85
    %s109 = sphi 0, %s111
    %s112 = sphi 0, %s109
    %s113 = sphi 0, %s112
    %s129 = sphi 0, %s113
    %s137 = sphi 0, %s139
    %s140 = sphi 0, %s137
    %s141 = sphi 0, %s140
    %s157 = sphi 0, %s141
  $region4: #{dice_loss.1} parent=0 // loop_header_branch
    %13 = sbr.rel (%p11) target = $region8
  $region5: #{dice_loss.1} parent=0 // loop_body
    %s15 = ssub.s32 %s10, 1
    %s16 = ssub.s32 %s10, 2
    %s26 = sadd.s32 1, %s19
    %p27 = scmp.ge.s32.totalorder %s26, 1
    %s28 = scalar_select %p27, 0, %s26
    %s29 = sadd.s32 1, %s18
    %s30 = scalar_select %p27, %s29, %s18
    %p31 = scmp.ge.s32.totalorder %s30, 1
    %s32 = scalar_select %p31, 0, %s30
    %s33 = sadd.s32 1, %s17
    %s34 = scalar_select %p31, %s33, %s17
    %p35 = scmp.ge.s32.totalorder %s34, 2
    %s36 = scalar_select %p35, 0, %s34
    %s37 = sadd.s32 %s18, %s19
    %p38 = scmp.lt.s32.totalorder %s37, 0
    %s39 = scalar_select %p38, %s37, 0
    %s40 = sadd.s32 %s32, %s28
    %p41 = scmp.lt.s32.totalorder %s40, 0
    %s42 = scalar_select %p41, %s40, 0
    %s43 = ssub.s32 %s17, %s36
    %s44 = ssub.s32 %s39, %s42
    %s45 = sor.u32 %s43, %s44
    %p46 = scmp.eq.s32.totalorder %s45, 0
    %s48 = sadd.s32 %s47, 1
    %s49 = scalar_select %p46, %s47, %s48
    %p52 = pneg %p46
    %p53 = scmp.eq.s32.totalorder %s10, 1
    %p54 = por %p52, %p53
    %p55 = scmp.ne.s32.totalorder %s47, %s50
    %p56 = scmp.eq.s32.totalorder %s10, 0
    %p57 = por %p55, %p56
    %p58 = scmp.ne.s32.totalorder %s47, %s50
    %p59 = scmp.eq.s32.totalorder %s15, 1
    %p60 = por %p58, %p59
    %p61 = scmp.ne.s32.totalorder %s50, %s51
    %p62 = scmp.eq.s32.totalorder %s15, 0
    %p63 = por %p61, %p62
    %p64 = scmp.ne.s32.totalorder %s50, %s51
    %p65 = scmp.eq.s32.totalorder %s16, 1
    %p66 = por %p64, %p65
    %p68 = scmp.ne.s32.totalorder %s51, %s67
    %p69 = scmp.eq.s32.totalorder %s16, 0
    %p70 = por %p68, %p69
    %s71 = sadd.s32 %s18, %s19
    %p72 = scmp.lt.s32.totalorder %s71, 0
    %s73 = scalar_select %p72, %s71, 0
    %s74 = sadd.s32 %s32, %s28
    %p75 = scmp.lt.s32.totalorder %s74, 0
    %s76 = scalar_select %p75, %s74, 0
    %s77 = ssub.s32 %s17, %s36
    %s78 = ssub.s32 %s73, %s76
    %s79 = sor.u32 %s77, %s78
    %p80 = scmp.eq.s32.totalorder %s79, 0
    %s82 = sadd.s32 %s81, 1
    %s83 = scalar_select %p80, %s81, %s82
    %p86 = pneg %p80
    %p87 = scmp.eq.s32.totalorder %s10, 1
    %p88 = por %p86, %p87
    %p89 = scmp.ne.s32.totalorder %s81, %s84
    %p90 = scmp.eq.s32.totalorder %s10, 0
    %p91 = por %p89, %p90
    %p92 = scmp.ne.s32.totalorder %s81, %s84
    %p93 = scmp.eq.s32.totalorder %s15, 1
    %p94 = por %p92, %p93
    %p95 = scmp.ne.s32.totalorder %s84, %s85
    %p96 = scmp.eq.s32.totalorder %s15, 0
    %p97 = por %p95, %p96
    %p98 = scmp.ne.s32.totalorder %s84, %s85
    %p99 = scmp.eq.s32.totalorder %s16, 1
    %p100 = por %p98, %p99
    %p102 = scmp.ne.s32.totalorder %s85, %s101
    %p103 = scmp.eq.s32.totalorder %s16, 0
    %p104 = por %p102, %p103
    %s105 = sadd.s32 %s17, %s18
    %s106 = sadd.s32 %s36, %s32
    %s107 = ssub.s32 %s105, %s106
    %p108 = scmp.eq.s32.totalorder %s107, 0
    %s110 = sadd.s32 %s109, 1
    %s111 = scalar_select %p108, %s109, %s110
    %p114 = pneg %p108
    %p115 = scmp.eq.s32.totalorder %s10, 1
    %p116 = por %p114, %p115
    %p117 = scmp.ne.s32.totalorder %s109, %s112
    %p118 = scmp.eq.s32.totalorder %s10, 0
    %p119 = por %p117, %p118
    %p120 = scmp.ne.s32.totalorder %s109, %s112
    %p121 = scmp.eq.s32.totalorder %s15, 1
    %p122 = por %p120, %p121
    %p123 = scmp.ne.s32.totalorder %s112, %s113
    %p124 = scmp.eq.s32.totalorder %s15, 0
    %p125 = por %p123, %p124
    %p126 = scmp.ne.s32.totalorder %s112, %s113
    %p127 = scmp.eq.s32.totalorder %s16, 1
    %p128 = por %p126, %p127
    %p130 = scmp.ne.s32.totalorder %s113, %s129
    %p131 = scmp.eq.s32.totalorder %s16, 0
    %p132 = por %p130, %p131
    %s133 = sadd.s32 %s17, %s18
    %s134 = sadd.s32 %s36, %s32
    %s135 = ssub.s32 %s133, %s134
    %p136 = scmp.eq.s32.totalorder %s135, 0
    %s138 = sadd.s32 %s137, 1
    %s139 = scalar_select %p136, %s137, %s138
    %p142 = pneg %p136
    %p143 = scmp.eq.s32.totalorder %s10, 1
    %p144 = por %p142, %p143
    %p145 = scmp.ne.s32.totalorder %s137, %s140
    %p146 = scmp.eq.s32.totalorder %s10, 0
    %p147 = por %p145, %p146
    %p148 = scmp.ne.s32.totalorder %s137, %s140
    %p149 = scmp.eq.s32.totalorder %s15, 1
    %p150 = por %p148, %p149
    %p151 = scmp.ne.s32.totalorder %s140, %s141
    %p152 = scmp.eq.s32.totalorder %s15, 0
    %p153 = por %p151, %p152
    %p154 = scmp.ne.s32.totalorder %s140, %s141
    %p155 = scmp.eq.s32.totalorder %s16, 1
    %p156 = por %p154, %p155
    %p158 = scmp.ne.s32.totalorder %s141, %s157
    %p159 = scmp.eq.s32.totalorder %s16, 0
    %p160 = por %p158, %p159
    %p161 = scmp.le.s32.totalorder 1, %s10
    %p162 = scmp.lt.s32.totalorder %s10, 3
    %p163 = pnand %p161, %p162
    %p164 = pneg %p163
    // Predicated region
    $region9: #{dice_loss.1} parent=5 // pred_check
      _
    $region10: #{dice_loss.1} parent=5 // pred_check_branch
      %166 = sbr.rel (%p163) target = $region12
    $region11: #{dice_loss.1} parent=5 // pred_region
      %s167 = ssub.s32 %s10, 1
    $region12: #{dice_loss.1} parent=5 // pred_fallthru
      _
    %p168 = scmp.lt.s32.totalorder %s10, 2
    // Predicated region
    $region13: #{dice_loss.1} parent=5 // pred_check
      %p169 = pneg %p168
    $region14: #{dice_loss.1} parent=5 // pred_check_branch
      %171 = sbr.rel (%p169) target = $region16
    $region15: #{dice_loss.1} parent=5 // pred_region
      // Predicated region
      $region17: #{dice_loss.1} parent=15 // pred_check
        %p172 = pneg %p57
      $region18: #{dice_loss.1} parent=15 // pred_check_branch
        %174 = sbr.rel (%p172) target = $region20
      $region19: #{dice_loss.1} parent=15 // pred_region
        %s175 = sadd.s32 %s18, %s19
        %p176 = scmp.lt.s32.totalorder %s175, 0
        %s177 = scalar_select %p176, %s175, 0
        %s178 = smul.u32 2, %s177
        %p179 = scmp.lt.s32.totalorder %s17, 1
        %s180 = scalar_select %p179, %s17, 1
        %p181 = scmp.lt.s32.totalorder %s178, 1
        %s182 = scalar_select %p181, %s178, 1
        %s183 = smul.addr %s180, 8
        %s184 = sadd.s32 %s182, %s183
        %s185 = smul.addr %s184, 8
        %s186 = scalar_lea.vmem %s0, %s185
        %s187 = sadd.s32 %s18, %s19
        %p188 = scmp.lt.s32.totalorder %s187, 0
        %s189 = scalar_select %p188, %s187, 0
        %s190 = smul.u32 2, %s189
      $region20: #{dice_loss.1} parent=15 // pred_fallthru
        _
      // Predicated region
      $region21: #{dice_loss.1} parent=15 // pred_check
        %p191 = pneg %p91
      $region22: #{dice_loss.1} parent=15 // pred_check_branch
        %193 = sbr.rel (%p191) target = $region24
      $region23: #{dice_loss.1} parent=15 // pred_region
        %s194 = sadd.s32 %s18, %s19
        %p195 = scmp.lt.s32.totalorder %s194, 0
        %s196 = scalar_select %p195, %s194, 0
        %s197 = smul.u32 2, %s196
        %p198 = scmp.lt.s32.totalorder %s17, 1
        %s199 = scalar_select %p198, %s17, 1
        %p200 = scmp.lt.s32.totalorder %s197, 1
        %s201 = scalar_select %p200, %s197, 1
        %s202 = smul.addr %s199, 2
        %s203 = sadd.s32 %s201, %s202
        %s204 = smul.addr %s203, 8
        %s205 = scalar_lea.vmem %s1, %s204
        %s206 = sadd.s32 %s18, %s19
        %p207 = scmp.lt.s32.totalorder %s206, 0
        %s208 = scalar_select %p207, %s206, 0
        %s209 = smul.u32 2, %s208
      $region24: #{dice_loss.1} parent=15 // pred_fallthru
        _
    $region16: #{dice_loss.1} parent=5 // pred_fallthru
      _
    %p210 = scmp.le.s32.totalorder 1, %s10
    %p211 = scmp.lt.s32.totalorder %s10, 3
    %p212 = pnand %p210, %p211
    %p213 = pneg %p212
    // Predicated region
    $region25: #{dice_loss.1} parent=5 // pred_check
      _
    $region26: #{dice_loss.1} parent=5 // pred_check_branch
      %215 = sbr.rel (%p212) target = $region28
    $region27: #{dice_loss.1} parent=5 // pred_region
      %s216 = ssub.s32 %s10, 1
      %s217 = sadd.s32 %s21, %s22
      %p218 = scmp.lt.s32.totalorder %s217, 0
      %s219 = scalar_select %p218, %s217, 0
      %s220 = smul.u32 2, %s219
      %p221 = scmp.lt.s32.totalorder %s20, 1
      %s222 = scalar_select %p221, %s20, 1
      %p223 = scmp.lt.s32.totalorder %s220, 1
      %s224 = scalar_select %p223, %s220, 1
      %s225 = smul.addr %s222, 8
      %s226 = sadd.s32 %s224, %s225
      %s227 = smul.addr %s226, 8
      %s228 = scalar_lea.vmem %s0, %s227
      %p229 = pneg %p63
      %p230 = pneg %p60
      %s231 = sadd.s32 %s21, %s22
      %p232 = scmp.lt.s32.totalorder %s231, 0
      %s233 = scalar_select %p232, %s231, 0
      %s234 = smul.u32 2, %s233
      %p235 = scmp.lt.s32.totalorder %s20, 1
      %s236 = scalar_select %p235, %s20, 1
      %p237 = scmp.lt.s32.totalorder %s234, 1
      %s238 = scalar_select %p237, %s234, 1
      %s239 = smul.addr %s236, 2
      %s240 = sadd.s32 %s238, %s239
      %s241 = smul.addr %s240, 8
      %s242 = scalar_lea.vmem %s1, %s241
      %p243 = pneg %p97
      %p244 = pneg %p94
      %p245 = pneg %p125
      %p246 = pneg %p122
      %s247 = sadd.s32 %s20, %s21
      %p248 = scmp.lt.s32.totalorder %s247, 1
      %s249 = scalar_select %p248, %s247, 1
      %s250 = smul.addr %s249, 4
      %s251 = scalar_lea.vmem %s2, %s250
      %p252 = pneg %p153
      %p253 = pneg %p150
      %s254 = sadd.s32 %s20, %s21
      %p255 = scmp.lt.s32.totalorder %s254, 1
      %s256 = scalar_select %p255, %s254, 1
      %s257 = smul.addr %s256, 4
      %s258 = scalar_lea.vmem %s3, %s257
      %s259 = sadd.s32 %s21, %s22
      %p260 = scmp.lt.s32.totalorder %s259, 0
      %s261 = scalar_select %p260, %s259, 0
      %s262 = smul.u32 2, %s261
      %p263 = scmp.lt.s32.totalorder %s20, 1
      %s264 = scalar_select %p263, %s20, 1
      %p265 = scmp.lt.s32.totalorder %s262, 1
      %s266 = scalar_select %p265, %s262, 1
      %s267 = smul.addr %s264, 8
      %s268 = sadd.s32 %s266, %s267
      %s269 = smul.addr %s268, 8
      %s270 = scalar_lea.vmem %s0, %s269
      %s271 = sadd.s32 %s21, %s22
      %p272 = scmp.lt.s32.totalorder %s271, 0
      %s273 = scalar_select %p272, %s271, 0
      %s274 = smul.u32 2, %s273
      %s275 = sadd.s32 %s21, %s22
      %p276 = scmp.lt.s32.totalorder %s275, 0
      %s277 = scalar_select %p276, %s275, 0
      %s278 = smul.u32 2, %s277
      %p279 = scmp.lt.s32.totalorder %s20, 1
      %s280 = scalar_select %p279, %s20, 1
      %p281 = scmp.lt.s32.totalorder %s278, 1
      %s282 = scalar_select %p281, %s278, 1
      %s283 = smul.addr %s280, 2
      %s284 = sadd.s32 %s282, %s283
      %s285 = smul.addr %s284, 8
      %s286 = scalar_lea.vmem %s1, %s285
      %s287 = sadd.s32 %s21, %s22
      %p288 = scmp.lt.s32.totalorder %s287, 0
      %s289 = scalar_select %p288, %s287, 0
      %s290 = smul.u32 2, %s289
      %s291 = sadd.s32 %s20, %s21
      %p292 = scmp.lt.s32.totalorder %s291, 1
      %s293 = scalar_select %p292, %s291, 1
      %s294 = smul.addr %s293, 4
      %s295 = scalar_lea.vmem %s2, %s294
      %s296 = sadd.s32 %s20, %s21
      %s297 = sadd.s32 %s20, %s21
      %p298 = scmp.lt.s32.totalorder %s297, 1
      %s299 = scalar_select %p298, %s297, 1
      %s300 = smul.addr %s299, 4
      %s301 = scalar_lea.vmem %s3, %s300
      %s302 = sadd.s32 %s20, %s21
      %p303 = scmp.eq.s32.totalorder %s22, 0
      // Predicated region
      $region29: #{dice_loss.1} parent=27 // pred_check
        %p304 = pneg %p303
      $region30: #{dice_loss.1} parent=27 // pred_check_branch
        %306 = sbr.rel (%p304) target = $region32
      $region31: #{dice_loss.1} parent=27 // pred_region
        %307 = vst [vmem:[%s295] sm:$0xf] 0.0
        %308 = vst [vmem:[%s301] sm:$0xf] 0.0
      $region32: #{dice_loss.1} parent=27 // pred_fallthru
        _
      %v309 = vld [vmem:[%s270] sm:$0xff]
      %v310 = vld [vmem:[%s270 + $0x10] sm:$0xff]
      %v311 = vld [vmem:[%s270 + $0x20] sm:$0xff]
      %v312 = vld [vmem:[%s270 + $0x30] sm:$0xff]
      %v313 = vmul.f32 %v309, 0.5
      %v314 = vmul.f32 %v310, 0.5
      %v315 = vmul.f32 %v311, 0.5
      %v316 = vmul.f32 %v312, 0.5
      %v317 = vtanh.pop %v313
      %v318 = vtanh.pop %v314
      %v319 = vtanh.pop %v315
      %v320 = vtanh.pop %v316
      %v321 = vmul.f32 %v317, 0.5
      %v322 = vmul.f32 %v318, 0.5
      %v323 = vmul.f32 %v319, 0.5
      %v324 = vmul.f32 %v320, 0.5
      %v325 = vadd.f32 %v321, 0.5
      %v326 = vadd.f32 %v322, 0.5
      %v327 = vadd.f32 %v323, 0.5
      %v328 = vadd.f32 %v324, 0.5
      %v329 = vld [vmem:[%s286] sm:$0xff]
      %vm330 = vcmp.eq.s32.totalorder %v329, 0
      %vm331 = vcmp.eq.s32.totalorder %v329, 1
      %vm332 = vcmp.eq.s32.totalorder %v329, 2
      %vm333 = vcmp.eq.s32.totalorder %v329, 3
      %v334 = vsel %vm330, %v325, 0.0
      %v335 = vsel %vm331, %v326, 0.0
      %v336 = vsel %vm332, %v327, 0.0
      %v337 = vsel %vm333, %v328, 0.0
      %v338 = vsel %vm330, 1, 0
      %v339 = vsel %vm331, 1, 0
      %v340 = vsel %vm332, 1, 0
      %v341 = vsel %vm333, 1, 0
      %v342 = vcvt.s32.f32 %v338
      %v343 = vcvt.s32.f32 %v339
      %v344 = vcvt.s32.f32 %v340
      %v345 = vcvt.s32.f32 %v341
      %v346 = vadd.f32 %v325, %v342
      %v347 = vadd.f32 %v326, %v343
      %v348 = vadd.f32 %v327, %v344
      %v349 = vadd.f32 %v328, %v345
      %v350 = vadd.f32 %v334, 0.0
      %v351 = vadd.f32 %v335, 0.0
      %v352 = vadd.f32 %v336, 0.0
      %v353 = vadd.f32 %v337, 0.0
      %v354 = vadd.f32 %v346, 0.0
      %v355 = vadd.f32 %v347, 0.0
      %v356 = vadd.f32 %v348, 0.0
      %v357 = vadd.f32 %v349, 0.0
      %s358 = scalar_lea.vmem %s270, 8
      %v359 = vld [vmem:[%s358] sm:$0xff]
      %v360 = vld [vmem:[%s358 + $0x10] sm:$0xff]
      %v361 = vld [vmem:[%s358 + $0x20] sm:$0xff]
      %v362 = vld [vmem:[%s358 + $0x30] sm:$0xff]
      %v363 = vmul.f32 %v359, 0.5
      %v364 = vmul.f32 %v360, 0.5
      %v365 = vmul.f32 %v361, 0.5
      %v366 = vmul.f32 %v362, 0.5
      %v367 = vtanh.pop %v363
      %v368 = vtanh.pop %v364
      %v369 = vtanh.pop %v365
      %v370 = vtanh.pop %v366
      %v371 = vmul.f32 %v367, 0.5
      %v372 = vmul.f32 %v368, 0.5
      %v373 = vmul.f32 %v369, 0.5
      %v374 = vmul.f32 %v370, 0.5
      %v375 = vadd.f32 %v371, 0.5
      %v376 = vadd.f32 %v372, 0.5
      %v377 = vadd.f32 %v373, 0.5
      %v378 = vadd.f32 %v374, 0.5
      %s379 = scalar_lea.vmem %s286, 8
      %v380 = vld [vmem:[%s379] sm:$0xff]
      %vm381 = vcmp.eq.s32.totalorder %v380, 0
      %vm382 = vcmp.eq.s32.totalorder %v380, 1
      %vm383 = vcmp.eq.s32.totalorder %v380, 2
      %vm384 = vcmp.eq.s32.totalorder %v380, 3
      %v385 = vsel %vm381, %v375, 0.0
      %v386 = vsel %vm382, %v376, 0.0
      %v387 = vsel %vm383, %v377, 0.0
      %v388 = vsel %vm384, %v378, 0.0
      %v389 = vsel %vm381, 1, 0
      %v390 = vsel %vm382, 1, 0
      %v391 = vsel %vm383, 1, 0
      %v392 = vsel %vm384, 1, 0
      %v393 = vcvt.s32.f32 %v389
      %v394 = vcvt.s32.f32 %v390
      %v395 = vcvt.s32.f32 %v391
      %v396 = vcvt.s32.f32 %v392
      %v397 = vadd.f32 %v375, %v393
      %v398 = vadd.f32 %v376, %v394
      %v399 = vadd.f32 %v377, %v395
      %v400 = vadd.f32 %v378, %v396
      %v401 = vadd.f32 %v350, %v385
      %v402 = vadd.f32 %v351, %v386
      %v403 = vadd.f32 %v352, %v387
      %v404 = vadd.f32 %v353, %v388
      %v405 = vadd.f32 %v354, %v397
      %v406 = vadd.f32 %v355, %v398
      %v407 = vadd.f32 %v356, %v399
      %v408 = vadd.f32 %v357, %v400
      %v409 = vld [vmem:[%s295] sm:$0xf]
      %v410 = vrot.slane %v401, 4
      %v411 = vadd.f32 %v401, %v410
      %v412 = vrot.slane %v411, 2
      %v413 = vadd.f32 %v411, %v412
      %v414 = vrot.slane %v413, 1
      %v415 = vadd.f32 %v413, %v414
      %v416 = vrot.slane %v402, 4
      %v417 = vadd.f32 %v402, %v416
      %v418 = vrot.slane %v417, 2
      %v419 = vadd.f32 %v417, %v418
      %v420 = vrot.slane %v419, 1
      %v421 = vadd.f32 %v419, %v420
      %v422 = vrot.slane %v403, 4
      %v423 = vadd.f32 %v403, %v422
      %v424 = vrot.slane %v423, 2
      %v425 = vadd.f32 %v423, %v424
      %v426 = vrot.slane %v425, 1
      %v427 = vadd.f32 %v425, %v426
      %v428 = vrot.slane %v404, 4
      %v429 = vadd.f32 %v404, %v428
      %v430 = vrot.slane %v429, 2
      %v431 = vadd.f32 %v429, %v430
      %v432 = vrot.slane %v431, 1
      %v433 = vadd.f32 %v431, %v432
      %vm438 = vcmask 1041409
      %v439 = vsel %vm438, %v421, %v415
      %vm440 = vcmask 1042434
      %v441 = vsel %vm440, %v427, %v439
      %vm442 = vcmask 1043459
      %v443 = vsel %vm442, %v433, %v441
      %v445 = vadd.f32 %v409, %v443
      %446 = vst [vmem:[%s295] sm:$0xf] %v445
      %v447 = vld [vmem:[%s301] sm:$0xf]
      %v448 = vrot.slane %v405, 4
      %v449 = vadd.f32 %v405, %v448
      %v450 = vrot.slane %v449, 2
      %v451 = vadd.f32 %v449, %v450
      %v452 = vrot.slane %v451, 1
      %v453 = vadd.f32 %v451, %v452
      %v454 = vrot.slane %v406, 4
      %v455 = vadd.f32 %v406, %v454
      %v456 = vrot.slane %v455, 2
      %v457 = vadd.f32 %v455, %v456
      %v458 = vrot.slane %v457, 1
      %v459 = vadd.f32 %v457, %v458
      %v460 = vrot.slane %v407, 4
      %v461 = vadd.f32 %v407, %v460
      %v462 = vrot.slane %v461, 2
      %v463 = vadd.f32 %v461, %v462
      %v464 = vrot.slane %v463, 1
      %v465 = vadd.f32 %v463, %v464
      %v466 = vrot.slane %v408, 4
      %v467 = vadd.f32 %v408, %v466
      %v468 = vrot.slane %v467, 2
      %v469 = vadd.f32 %v467, %v468
      %v470 = vrot.slane %v469, 1
      %v471 = vadd.f32 %v469, %v470
      %v476 = vsel %vm438, %v459, %v453
      %v477 = vsel %vm440, %v465, %v476
      %v478 = vsel %vm442, %v471, %v477
      %v480 = vadd.f32 %v447, %v478
      %481 = vst [vmem:[%s301] sm:$0xf] %v480
      %s482 = sadd.s32 %s20, %s21
      %p483 = scmp.lt.s32.totalorder %s482, 1
      %s484 = scalar_select %p483, %s482, 1
      %s485 = smul.addr %s484, 4
      %s486 = scalar_lea.vmem %s2, %s485
      %s487 = sadd.s32 %s20, %s21
      %p488 = scmp.lt.s32.totalorder %s487, 1
      %s489 = scalar_select %p488, %s487, 1
      %s490 = smul.addr %s489, 4
      %s491 = scalar_lea.vmem %s3, %s490
      // Predicated region
      $region33: #{dice_loss.1} parent=27 // pred_check
        %p492 = pneg %p122
      $region34: #{dice_loss.1} parent=27 // pred_check_branch
        %494 = sbr.rel (%p492) target = $region36
      $region35: #{dice_loss.1} parent=27 // pred_region
        %s495 = sadd.s32 %s20, %s21
      $region36: #{dice_loss.1} parent=27 // pred_fallthru
        _
      // Predicated region
      $region37: #{dice_loss.1} parent=27 // pred_check
        %p496 = pneg %p150
      $region38: #{dice_loss.1} parent=27 // pred_check_branch
        %498 = sbr.rel (%p496) target = $region40
      $region39: #{dice_loss.1} parent=27 // pred_region
        %s499 = sadd.s32 %s20, %s21
      $region40: #{dice_loss.1} parent=27 // pred_fallthru
        _
    $region28: #{dice_loss.1} parent=5 // pred_fallthru
      _
    %p500 = scmp.le.s32.totalorder 2, %s10
    // Predicated region
    $region41: #{dice_loss.1} parent=5 // pred_check
      %p501 = pneg %p500
    $region42: #{dice_loss.1} parent=5 // pred_check_branch
      %503 = sbr.rel (%p501) target = $region44
    $region43: #{dice_loss.1} parent=5 // pred_region
      %s504 = ssub.s32 %s10, 2
      // Predicated region
      $region45: #{dice_loss.1} parent=43 // pred_check
        %p505 = pneg %p128
      $region46: #{dice_loss.1} parent=43 // pred_check_branch
        %507 = sbr.rel (%p505) target = $region48
      $region47: #{dice_loss.1} parent=43 // pred_region
        %s508 = sadd.s32 %s23, %s24
        %p509 = scmp.lt.s32.totalorder %s508, 1
        %s510 = scalar_select %p509, %s508, 1
        %s511 = smul.addr %s510, 4
        %s512 = scalar_lea.vmem %s2, %s511
      $region48: #{dice_loss.1} parent=43 // pred_fallthru
        _
      // Predicated region
      $region49: #{dice_loss.1} parent=43 // pred_check
        %p513 = pneg %p156
      $region50: #{dice_loss.1} parent=43 // pred_check_branch
        %515 = sbr.rel (%p513) target = $region52
      $region51: #{dice_loss.1} parent=43 // pred_region
        %s516 = sadd.s32 %s23, %s24
        %p517 = scmp.lt.s32.totalorder %s516, 1
        %s518 = scalar_select %p517, %s516, 1
        %s519 = smul.addr %s518, 4
        %s520 = scalar_lea.vmem %s3, %s519
      $region52: #{dice_loss.1} parent=43 // pred_fallthru
        _
    $region44: #{dice_loss.1} parent=5 // pred_fallthru
      _
  $region6: #{dice_loss.1} parent=0 // loop_footer
    %s14 = sadd.s32 1, %s10
  $region7: #{dice_loss.1} parent=0 // loop_footer_branch
    %9 = sbr.rel target = $region3
  $region8: #{dice_loss.1} parent=0 // loop_exit
    _

</llo_original>
